<compile_context>
chip_gen: v6e
topology: v6e:2x2x1
jax: 0.10.0
libtpu: 0.0.40
codegen_flags: <defaults>
</compile_context>

<pallas_src>
import jax
import jax.numpy as jnp
from jax.experimental import pallas as pl
from jax.experimental.pallas import tpu as pltpu


def _round_up(x: int, m: int) -> int:
    return (x + m - 1) // m * m


# ----------------------------- Pallas kernel -------------------------------

def _edge_decoder_kernel(zs_ref, zd_ref, w1a_ref, w1b_ref, b1_ref, w2_ref,
                         b2_ref, o_ref):
    """Fused lin1 -> ReLU -> lin2 on one tile of tile_e edges.

    zs_ref:  [tile_e, H]  bf16   gathered z_src rows
    zd_ref:  [tile_e, H]  bf16   gathered z_dst rows
    w1a_ref: [H, Hp]      bf16   W1[:H, :]  (src half)
    w1b_ref: [H, Hp]      bf16   W1[H:, :]  (dst half)
    b1_ref:  [1, Hp]      f32
    w2_ref:  [1, Hp]      f32    lin2 weight as a row vector
    b2_ref:  [1]          f32    (SMEM scalar)
    o_ref:   [1, tile_e]  f32    lane-dense scores
    """
    # lin1 on the MXU: two K=H dots replace the single K=2H dot on the concat.
    h = jnp.dot(zs_ref[...], w1a_ref[...], preferred_element_type=jnp.float32)
    h = h + jnp.dot(zd_ref[...], w1b_ref[...],
                    preferred_element_type=jnp.float32)        # [tile_e, Hp]
    h = jnp.maximum(h + b1_ref[...], 0.0)                      # bias + ReLU (VPU)

    # lin2 (Hp -> 1): weight the hidden activations on the VPU, transpose the
    # tile (XLU), reduce over sublanes -> scores already lane-dense [1, tile_e].
    hw = h * w2_ref[...]                                       # [tile_e, Hp]
    scores = jnp.sum(hw.T, axis=0, keepdims=True)              # [1, tile_e]
    o_ref[...] = scores + b2_ref[0]


# ------------------------------- wrapper ------------------------------------

def edge_decoder(params, z_src, z_dst, edge_label_index, *, tile_e=1024):
    """JAX/Pallas equivalent of EdgeDecoder.forward."""
    w1, b1, w2, b2 = params["w1"], params["b1"], params["w2"], params["b2"]
    two_h, hidden = w1.shape           # w1 stored as [2*hidden, hidden] (x @ W)
    h_in = two_h // 2

    row, col = edge_label_index[0], edge_label_index[1]
    num_edges = row.shape[0]

    # Tile selection: multiple of 128 lanes; cap so the grid keeps >= 2 steps
    # whenever possible (v7x has 2 TensorCores; "parallel" axis shards them).
    half = _round_up(max((num_edges + 1) // 2, 1), 128)
    te = max(128, min(tile_e, half))
    ep = _round_up(num_edges, te)
    n_tiles = ep // te

    # Cast node tables to bf16 BEFORE the gather; pad the tiny index vectors
    # (not the gathered tensors) so the gather directly emits padded-size arrays.
    pad = ep - num_edges
    row_p = jnp.pad(row.astype(jnp.int32), (0, pad))
    col_p = jnp.pad(col.astype(jnp.int32), (0, pad))
    zs = z_src.astype(jnp.bfloat16)[row_p]                     # [ep, H] bf16
    zd = z_dst.astype(jnp.bfloat16)[col_p]                     # [ep, H] bf16

    # Small weight/bias tensors: pad hidden dim to a lane-dense 128 multiple.
    hp = _round_up(hidden, 128)
    w1a = (jnp.zeros((h_in, hp), jnp.bfloat16)
           .at[:, :hidden].set(w1[:h_in].astype(jnp.bfloat16)))
    w1b = (jnp.zeros((h_in, hp), jnp.bfloat16)
           .at[:, :hidden].set(w1[h_in:].astype(jnp.bfloat16)))
    b1_p = jnp.zeros((1, hp), jnp.float32).at[0, :hidden].set(b1.astype(jnp.float32))
    w2_p = jnp.zeros((1, hp), jnp.float32).at[0, :hidden].set(w2[:, 0].astype(jnp.float32))
    b2_p = jnp.reshape(b2, (1,)).astype(jnp.float32)

    flops = 4 * ep * h_in * hp + 4 * ep * hp
    bytes_accessed = (2 * ep * h_in * 2) + ep * 4 + (2 * h_in * hp * 2) + (2 * hp * 4) + 4

    out = pl.pallas_call(
        _edge_decoder_kernel,
        out_shape=jax.ShapeDtypeStruct((1, ep), jnp.float32),
        grid=(n_tiles,),
        in_specs=[
            pl.BlockSpec((te, h_in), lambda i: (i, 0)),   # z_src rows tile
            pl.BlockSpec((te, h_in), lambda i: (i, 0)),   # z_dst rows tile
            pl.BlockSpec((h_in, hp), lambda i: (0, 0)),   # W1 src half (resident)
            pl.BlockSpec((h_in, hp), lambda i: (0, 0)),   # W1 dst half (resident)
            pl.BlockSpec((1, hp), lambda i: (0, 0)),      # b1
            pl.BlockSpec((1, hp), lambda i: (0, 0)),      # w2 row
            pl.BlockSpec(memory_space=pltpu.MemorySpace.SMEM),  # b2 scalar
        ],
        out_specs=pl.BlockSpec((1, te), lambda i: (0, i)),      # lane-dense scores
        compiler_params=pltpu.CompilerParams(
            dimension_semantics=("parallel",)),
        cost_estimate=pl.CostEstimate(flops=flops, transcendentals=0,
                                      bytes_accessed=bytes_accessed),
    )(zs, zd, w1a, w1b, b1_p, w2_p, b2_p)

    return out[0, :num_edges]                                   # == z.view(-1)


def init_params(key, hidden_channels):
    """Deterministic init matching torch.nn.Linear's U(-1/sqrt(fan_in), ...)."""
    k1, k2, k3, k4 = jax.random.split(key, 4)

    def uni(k, shape, fan_in):
        bound = 1.0 / (fan_in ** 0.5)
        return jax.random.uniform(k, shape, jnp.float32, -bound, bound)

    return {
        # lin1: Linear(2*hidden, hidden), stored [in, out] so kernel does x @ W
        "w1": uni(k1, (2 * hidden_channels, hidden_channels), 2 * hidden_channels),
        "b1": uni(k2, (hidden_channels,), 2 * hidden_channels),
        # lin2: Linear(hidden, 1)
        "w2": uni(k3, (hidden_channels, 1), hidden_channels),
        "b2": uni(k4, (1,), hidden_channels),
    }


# --------------------------------- main --------------------------------------

if __name__ == "__main__":
    key = jax.random.PRNGKey(0)
    kz_src, kz_dst, k_row, k_col, k_params = jax.random.split(key, 5)

    hidden_channels = 64          # as in examples/hetero/bipartite_sage_unsup.py
    n_src, n_dst, num_edges = 48, 40, 300

    z_src = jax.random.normal(kz_src, (n_src, hidden_channels), jnp.float32)
    z_dst = jax.random.normal(kz_dst, (n_dst, hidden_channels), jnp.float32)
    edge_label_index = jnp.stack([
        jax.random.randint(k_row, (num_edges,), 0, n_src),
        jax.random.randint(k_col, (num_edges,), 0, n_dst),
    ]).astype(jnp.int32)

    params = init_params(k_params, hidden_channels)

    edge_decoder_jit = jax.jit(edge_decoder)   # lets XLA fuse cast/pad/gather
    out = edge_decoder_jit(params, z_src, z_dst, edge_label_index)
    out = jax.block_until_ready(out)

    # Pure-JAX f32 reference (EdgeDecoder.forward semantics).
    row, col = edge_label_index[0], edge_label_index[1]
    zcat = jnp.concatenate([z_src[row], z_dst[col]], axis=-1)
    h_ref = jnp.maximum(
        jnp.dot(zcat, params["w1"], precision=jax.lax.Precision.HIGHEST)
        + params["b1"][None, :], 0.0)
    ref = (jnp.dot(h_ref, params["w2"], precision=jax.lax.Precision.HIGHEST)
           + params["b2"][None, :])[:, 0]

    assert out.shape == (num_edges,)
    assert bool(jnp.all(jnp.isfinite(out)))
    # bf16 MXU inputs with f32 accumulation -> compare at bf16-level tolerance.
    assert bool(jnp.allclose(out, ref, atol=5e-2, rtol=5e-2)), \
        float(jnp.max(jnp.abs(out - ref)))
    print("KERNEL_OK")
</pallas_src>

<mosaic_0001>
module attributes {stable_mosaic.version = 11 : i64} {
  func.func @_edge_decoder_kernel(%arg0: i32, %arg1: memref<256x64xbf16, #tpu.memory_space<vmem>>, %arg2: memref<256x64xbf16, #tpu.memory_space<vmem>>, %arg3: memref<64x128xbf16, #tpu.memory_space<vmem>>, %arg4: memref<64x128xbf16, #tpu.memory_space<vmem>>, %arg5: memref<1x128xf32, #tpu.memory_space<vmem>>, %arg6: memref<1x128xf32, #tpu.memory_space<vmem>>, %arg7: memref<1xf32, #tpu.memory_space<smem>>, %arg8: memref<1x256xf32, #tpu.memory_space<vmem>>) attributes {dimension_semantics = [#tpu.dimension_semantics<parallel>], iteration_bounds = array<i64: 2>, scalar_prefetch = 0 : i64, scratch_operands = 0 : i64, tpu.core_type = #tpu.core_type<tc>, window_params = [{transform_indices = @transform_0, window_bounds = array<i64: 256, 64>}, {transform_indices = @transform_1, window_bounds = array<i64: 256, 64>}, {pipeline_mode = #tpu.pipeline_mode<synchronous>, transform_indices = @transform_2, window_bounds = array<i64: 64, 128>}, {pipeline_mode = #tpu.pipeline_mode<synchronous>, transform_indices = @transform_3, window_bounds = array<i64: 64, 128>}, {pipeline_mode = #tpu.pipeline_mode<synchronous>, transform_indices = @transform_4, window_bounds = array<i64: 1, 128>}, {pipeline_mode = #tpu.pipeline_mode<synchronous>, transform_indices = @transform_5, window_bounds = array<i64: 1, 128>}, {transform_indices = @transform_6, window_bounds = array<i64: 1>}, {transform_indices = @transform_7, window_bounds = array<i64: 1, 256>}]} {
    %c0 = arith.constant 0 : index
    %c0_0 = arith.constant 0 : index
    %0 = vector.load %arg1[%c0, %c0_0] : memref<256x64xbf16, #tpu.memory_space<vmem>>, vector<256x64xbf16>
    %c0_1 = arith.constant 0 : index
    %c0_2 = arith.constant 0 : index
    %1 = vector.load %arg3[%c0_1, %c0_2] : memref<64x128xbf16, #tpu.memory_space<vmem>>, vector<64x128xbf16>
    %cst = arith.constant dense<0.000000e+00> : vector<256x128xf32>
    %2 = tpu.matmul %0, %1, %cst {dimension_numbers = #tpu.dot_dimension_numbers<[1], [0], [0], [1], [0, 0, 1, 1], [], []>} : vector<256x64xbf16>, vector<64x128xbf16>, vector<256x128xf32> -> vector<256x128xf32>
    %c0_3 = arith.constant 0 : index
    %c0_4 = arith.constant 0 : index
    %3 = vector.load %arg2[%c0_3, %c0_4] : memref<256x64xbf16, #tpu.memory_space<vmem>>, vector<256x64xbf16>
    %c0_5 = arith.constant 0 : index
    %c0_6 = arith.constant 0 : index
    %4 = vector.load %arg4[%c0_5, %c0_6] : memref<64x128xbf16, #tpu.memory_space<vmem>>, vector<64x128xbf16>
    %cst_7 = arith.constant dense<0.000000e+00> : vector<256x128xf32>
    %5 = tpu.matmul %3, %4, %cst_7 {dimension_numbers = #tpu.dot_dimension_numbers<[1], [0], [0], [1], [0, 0, 1, 1], [], []>} : vector<256x64xbf16>, vector<64x128xbf16>, vector<256x128xf32> -> vector<256x128xf32>
    %6 = arith.addf %2, %5 : vector<256x128xf32>
    %c0_8 = arith.constant 0 : index
    %c0_9 = arith.constant 0 : index
    %7 = vector.load %arg5[%c0_8, %c0_9] : memref<1x128xf32, #tpu.memory_space<vmem>>, vector<1x128xf32>
    %8 = vector.broadcast %7 : vector<1x128xf32> to vector<256x128xf32>
    %9 = arith.addf %6, %8 : vector<256x128xf32>
    %cst_10 = arith.constant 0.000000e+00 : f32
    %10 = vector.broadcast %cst_10 : f32 to vector<256x128xf32>
    %11 = arith.maximumf %9, %10 : vector<256x128xf32>
    %c0_11 = arith.constant 0 : index
    %c0_12 = arith.constant 0 : index
    %12 = vector.load %arg6[%c0_11, %c0_12] : memref<1x128xf32, #tpu.memory_space<vmem>>, vector<1x128xf32>
    %13 = vector.broadcast %12 : vector<1x128xf32> to vector<256x128xf32>
    %14 = arith.mulf %11, %13 : vector<256x128xf32>
    %15 = tpu.transpose %14, [1, 0] : vector<256x128xf32> -> vector<128x256xf32>
    %cst_13 = arith.constant dense<0.000000e+00> : vector<256xf32>
    %16 = vector.multi_reduction <add>, %15, %cst_13 [0] : vector<128x256xf32> to vector<256xf32>
    %17 = vector.shape_cast %16 : vector<256xf32> to vector<1x256xf32>
    %c0_14 = arith.constant 0 : index
    %18 = memref.load %arg7[%c0_14] : memref<1xf32, #tpu.memory_space<smem>>
    %19 = vector.broadcast %18 : f32 to vector<1x256xf32>
    %20 = arith.addf %17, %19 : vector<1x256xf32>
    %c0_15 = arith.constant 0 : index
    %c0_16 = arith.constant 0 : index
    %21 = vector.load %arg8[%c0_15, %c0_16] : memref<1x256xf32, #tpu.memory_space<vmem>>, vector<1x256xf32>
    tpu.vector_store %arg8[%c0_15, %c0_16], %20 {strides = array<i32>} : memref<1x256xf32, #tpu.memory_space<vmem>>, vector<1x256xf32>,
    return
  }
  func.func @transform_0(%arg0: i32) -> (i32, i32) {
    %c0_i32 = arith.constant 0 : i32
    %c0_i32_0 = arith.constant 0 : i32
    return %arg0, %c0_i32 : i32, i32
  }
  func.func @transform_1(%arg0: i32) -> (i32, i32) {
    %c0_i32 = arith.constant 0 : i32
    %c0_i32_0 = arith.constant 0 : i32
    return %arg0, %c0_i32 : i32, i32
  }
  func.func @transform_2(%arg0: i32) -> (i32, i32) {
    %c0_i32 = arith.constant 0 : i32
    %c0_i32_0 = arith.constant 0 : i32
    %c0_i32_1 = arith.constant 0 : i32
    return %c0_i32, %c0_i32_0 : i32, i32
  }
  func.func @transform_3(%arg0: i32) -> (i32, i32) {
    %c0_i32 = arith.constant 0 : i32
    %c0_i32_0 = arith.constant 0 : i32
    %c0_i32_1 = arith.constant 0 : i32
    return %c0_i32, %c0_i32_0 : i32, i32
  }
  func.func @transform_4(%arg0: i32) -> (i32, i32) {
    %c0_i32 = arith.constant 0 : i32
    %c0_i32_0 = arith.constant 0 : i32
    %c0_i32_1 = arith.constant 0 : i32
    return %c0_i32, %c0_i32_0 : i32, i32
  }
  func.func @transform_5(%arg0: i32) -> (i32, i32) {
    %c0_i32 = arith.constant 0 : i32
    %c0_i32_0 = arith.constant 0 : i32
    %c0_i32_1 = arith.constant 0 : i32
    return %c0_i32, %c0_i32_0 : i32, i32
  }
  func.func @transform_6(%arg0: i32) -> i32 {
    %c0_i32 = arith.constant 0 : i32
    %c0_i32_0 = arith.constant 0 : i32
    return %c0_i32 : i32
  }
  func.func @transform_7(%arg0: i32) -> (i32, i32) {
    %c0_i32 = arith.constant 0 : i32
    %c0_i32_0 = arith.constant 0 : i32
    return %c0_i32, %arg0 : i32, i32
  }
}

</mosaic_0001>

<llo_original>
// kernel: edge_decoder.1
$region0: #{edge_decoder.1}
  #allocation0 [shape = 'u32[]', space=smem, size = 0x4, offset = 0x4, fixed_abs, tag = 'smem constant byte address 0x4 - core index']
  #allocation1 [shape = 'u32[144,128]{1,0:T(1,128)}', space=vmem, size = 0x12000, scoped, tag = 'internal scratch']
  #allocation2 [shape = 'f32[1]{0:T(128)S(6)}', space=smem, size = 0x200, scoped, tag = 'scoped memory for edge_decoder.1']
  %s0 = inlined_call_operand.vmem [shape: bf16[512,64], index: 0, kind: input, shape index: {}]
  %s1 = inlined_call_operand.vmem [shape: bf16[512,64], index: 1, kind: input, shape index: {}]
  %s2 = inlined_call_operand.vmem [shape: bf16[64,128], index: 2, kind: input, shape index: {}]
  %s3 = inlined_call_operand.vmem [shape: bf16[64,128], index: 3, kind: input, shape index: {}]
  %s4 = inlined_call_operand.vmem [shape: f32[1,128], index: 4, kind: input, shape index: {}]
  %s5 = inlined_call_operand.vmem [shape: f32[1,128], index: 5, kind: input, shape index: {}]
  %s6 = inlined_call_operand.<no memory space> [shape: f32[1], index: 6, kind: input, shape index: {}]
  %s7 = inlined_call_operand.vmem [shape: f32[1,512], index: 7, kind: output, shape index: {}]
  %s8 = sld [smem:[#allocation0]]
  $region61: #{edge_decoder.1} parent=0
    _
  %s10 = ssub.s32 1, %s8
  %s11 = scalar_select 0, %s10, %s8
  %12 = sst [smem:[#allocation2]] %s6
  loop: start=0, step=1, limit=4
  $region2: #{edge_decoder.1} parent=0 // loop_pre_header
    _
  $region3: #{edge_decoder.1} parent=0 // loop_header
    %s14 = sphi 0, %s18
    %p15 = scmp.ge.s32.totalorder %s14, 4
    %s24 = sphi 0, %s26
    %s27 = sphi 0, %s24
    %s28 = sphi 0, %s27
    %s44 = sphi 0, %s28
    %s50 = sphi 0, %s52
    %s53 = sphi 0, %s50
    %s54 = sphi 0, %s53
    %s70 = sphi 0, %s54
    %s74 = sphi 0, %s74
    %s76 = sphi 0, %s74
    %s77 = sphi 0, %s76
    %s91 = sphi 0, %s77
    %s95 = sphi 0, %s95
    %s97 = sphi 0, %s95
    %s98 = sphi 0, %s97
    %s112 = sphi 0, %s98
    %s116 = sphi 0, %s116
    %s118 = sphi 0, %s116
    %s119 = sphi 0, %s118
    %s133 = sphi 0, %s119
    %s137 = sphi 0, %s137
    %s139 = sphi 0, %s137
    %s140 = sphi 0, %s139
    %s154 = sphi 0, %s140
    %s158 = sphi 0, %s158
    %s160 = sphi 0, %s158
    %s161 = sphi 0, %s160
    %s175 = sphi 0, %s161
    %s181 = sphi 0, %s183
    %s184 = sphi 0, %s181
    %s185 = sphi 0, %s184
    %s201 = sphi 0, %s185
  $region4: #{edge_decoder.1} parent=0 // loop_header_branch
    %17 = sbr.rel (%p15) target = $region8
  $region5: #{edge_decoder.1} parent=0 // loop_body
    %s19 = ssub.s32 %s14, 1
    %s20 = ssub.s32 %s14, 2
    %s21 = sadd.s32 %s14, 1
    %s22 = ssub.s32 %s14, %s21
    %p23 = scmp.eq.s32.totalorder %s22, 0
    %s25 = sadd.s32 %s24, 1
    %s26 = scalar_select %p23, %s24, %s25
    %p29 = pneg %p23
    %p30 = scmp.eq.s32.totalorder %s14, 1
    %p31 = por %p29, %p30
    %p32 = scmp.ne.s32.totalorder %s24, %s27
    %p33 = scmp.eq.s32.totalorder %s14, 0
    %p34 = por %p32, %p33
    %p35 = scmp.ne.s32.totalorder %s24, %s27
    %p36 = scmp.eq.s32.totalorder %s19, 1
    %p37 = por %p35, %p36
    %p38 = scmp.ne.s32.totalorder %s27, %s28
    %p39 = scmp.eq.s32.totalorder %s19, 0
    %p40 = por %p38, %p39
    %p41 = scmp.ne.s32.totalorder %s27, %s28
    %p42 = scmp.eq.s32.totalorder %s20, 1
    %p43 = por %p41, %p42
    %p45 = scmp.ne.s32.totalorder %s28, %s44
    %p46 = scmp.eq.s32.totalorder %s20, 0
    %p47 = por %p45, %p46
    %s48 = ssub.s32 %s14, %s21
    %p49 = scmp.eq.s32.totalorder %s48, 0
    %s51 = sadd.s32 %s50, 1
    %s52 = scalar_select %p49, %s50, %s51
    %p55 = pneg %p49
    %p56 = scmp.eq.s32.totalorder %s14, 1
    %p57 = por %p55, %p56
    %p58 = scmp.ne.s32.totalorder %s50, %s53
    %p59 = scmp.eq.s32.totalorder %s14, 0
    %p60 = por %p58, %p59
    %p61 = scmp.ne.s32.totalorder %s50, %s53
    %p62 = scmp.eq.s32.totalorder %s19, 1
    %p63 = por %p61, %p62
    %p64 = scmp.ne.s32.totalorder %s53, %s54
    %p65 = scmp.eq.s32.totalorder %s19, 0
    %p66 = por %p64, %p65
    %p67 = scmp.ne.s32.totalorder %s53, %s54
    %p68 = scmp.eq.s32.totalorder %s20, 1
    %p69 = por %p67, %p68
    %p71 = scmp.ne.s32.totalorder %s54, %s70
    %p72 = scmp.eq.s32.totalorder %s20, 0
    %p73 = por %p71, %p72
    %s75 = sadd.s32 %s74, 1
    %p78 = scmp.eq.s32.totalorder %s14, 1
    %p79 = scmp.ne.s32.totalorder %s74, %s76
    %p80 = scmp.eq.s32.totalorder %s14, 0
    %p81 = por %p79, %p80
    %p82 = scmp.ne.s32.totalorder %s74, %s76
    %p83 = scmp.eq.s32.totalorder %s19, 1
    %p84 = por %p82, %p83
    %p85 = scmp.ne.s32.totalorder %s76, %s77
    %p86 = scmp.eq.s32.totalorder %s19, 0
    %p87 = por %p85, %p86
    %p88 = scmp.ne.s32.totalorder %s76, %s77
    %p89 = scmp.eq.s32.totalorder %s20, 1
    %p90 = por %p88, %p89
    %p92 = scmp.ne.s32.totalorder %s77, %s91
    %p93 = scmp.eq.s32.totalorder %s20, 0
    %p94 = por %p92, %p93
    %s96 = sadd.s32 %s95, 1
    %p99 = scmp.eq.s32.totalorder %s14, 1
    %p100 = scmp.ne.s32.totalorder %s95, %s97
    %p101 = scmp.eq.s32.totalorder %s14, 0
    %p102 = por %p100, %p101
    %p103 = scmp.ne.s32.totalorder %s95, %s97
    %p104 = scmp.eq.s32.totalorder %s19, 1
    %p105 = por %p103, %p104
    %p106 = scmp.ne.s32.totalorder %s97, %s98
    %p107 = scmp.eq.s32.totalorder %s19, 0
    %p108 = por %p106, %p107
    %p109 = scmp.ne.s32.totalorder %s97, %s98
    %p110 = scmp.eq.s32.totalorder %s20, 1
    %p111 = por %p109, %p110
    %p113 = scmp.ne.s32.totalorder %s98, %s112
    %p114 = scmp.eq.s32.totalorder %s20, 0
    %p115 = por %p113, %p114
    %s117 = sadd.s32 %s116, 1
    %p120 = scmp.eq.s32.totalorder %s14, 1
    %p121 = scmp.ne.s32.totalorder %s116, %s118
    %p122 = scmp.eq.s32.totalorder %s14, 0
    %p123 = por %p121, %p122
    %p124 = scmp.ne.s32.totalorder %s116, %s118
    %p125 = scmp.eq.s32.totalorder %s19, 1
    %p126 = por %p124, %p125
    %p127 = scmp.ne.s32.totalorder %s118, %s119
    %p128 = scmp.eq.s32.totalorder %s19, 0
    %p129 = por %p127, %p128
    %p130 = scmp.ne.s32.totalorder %s118, %s119
    %p131 = scmp.eq.s32.totalorder %s20, 1
    %p132 = por %p130, %p131
    %p134 = scmp.ne.s32.totalorder %s119, %s133
    %p135 = scmp.eq.s32.totalorder %s20, 0
    %p136 = por %p134, %p135
    %s138 = sadd.s32 %s137, 1
    %p141 = scmp.eq.s32.totalorder %s14, 1
    %p142 = scmp.ne.s32.totalorder %s137, %s139
    %p143 = scmp.eq.s32.totalorder %s14, 0
    %p144 = por %p142, %p143
    %p145 = scmp.ne.s32.totalorder %s137, %s139
    %p146 = scmp.eq.s32.totalorder %s19, 1
    %p147 = por %p145, %p146
    %p148 = scmp.ne.s32.totalorder %s139, %s140
    %p149 = scmp.eq.s32.totalorder %s19, 0
    %p150 = por %p148, %p149
    %p151 = scmp.ne.s32.totalorder %s139, %s140
    %p152 = scmp.eq.s32.totalorder %s20, 1
    %p153 = por %p151, %p152
    %p155 = scmp.ne.s32.totalorder %s140, %s154
    %p156 = scmp.eq.s32.totalorder %s20, 0
    %p157 = por %p155, %p156
    %s159 = sadd.s32 %s158, 1
    %p162 = scmp.eq.s32.totalorder %s14, 1
    %p163 = scmp.ne.s32.totalorder %s158, %s160
    %p164 = scmp.eq.s32.totalorder %s14, 0
    %p165 = por %p163, %p164
    %p166 = scmp.ne.s32.totalorder %s158, %s160
    %p167 = scmp.eq.s32.totalorder %s19, 1
    %p168 = por %p166, %p167
    %p169 = scmp.ne.s32.totalorder %s160, %s161
    %p170 = scmp.eq.s32.totalorder %s19, 0
    %p171 = por %p169, %p170
    %p172 = scmp.ne.s32.totalorder %s160, %s161
    %p173 = scmp.eq.s32.totalorder %s20, 1
    %p174 = por %p172, %p173
    %p176 = scmp.ne.s32.totalorder %s161, %s175
    %p177 = scmp.eq.s32.totalorder %s20, 0
    %p178 = por %p176, %p177
    %s179 = ssub.s32 %s14, %s21
    %p180 = scmp.eq.s32.totalorder %s179, 0
    %s182 = sadd.s32 %s181, 1
    %s183 = scalar_select %p180, %s181, %s182
    %p186 = pneg %p180
    %p187 = scmp.eq.s32.totalorder %s14, 1
    %p188 = por %p186, %p187
    %p189 = scmp.ne.s32.totalorder %s181, %s184
    %p190 = scmp.eq.s32.totalorder %s14, 0
    %p191 = por %p189, %p190
    %p192 = scmp.ne.s32.totalorder %s181, %s184
    %p193 = scmp.eq.s32.totalorder %s19, 1
    %p194 = por %p192, %p193
    %p195 = scmp.ne.s32.totalorder %s184, %s185
    %p196 = scmp.eq.s32.totalorder %s19, 0
    %p197 = por %p195, %p196
    %p198 = scmp.ne.s32.totalorder %s184, %s185
    %p199 = scmp.eq.s32.totalorder %s20, 1
    %p200 = por %p198, %p199
    %p202 = scmp.ne.s32.totalorder %s185, %s201
    %p203 = scmp.eq.s32.totalorder %s20, 0
    %p204 = por %p202, %p203
    %p205 = scmp.le.s32.totalorder 1, %s14
    %p206 = scmp.lt.s32.totalorder %s14, 3
    %p207 = pnand %p205, %p206
    %p208 = pneg %p207
    // Predicated region
    $region9: #{edge_decoder.1} parent=5 // pred_check
      _
    $region10: #{edge_decoder.1} parent=5 // pred_check_branch
      %210 = sbr.rel (%p207) target = $region12
    $region11: #{edge_decoder.1} parent=5 // pred_region
      %s211 = ssub.s32 %s14, 1
      // Predicated region
      $region13: #{edge_decoder.1} parent=11 // pred_check
        %p212 = pneg %p87
      $region14: #{edge_decoder.1} parent=11 // pred_check_branch
        %214 = sbr.rel (%p212) target = $region16
      $region15: #{edge_decoder.1} parent=11 // pred_region
        _
      $region16: #{edge_decoder.1} parent=11 // pred_fallthru
        _
      // Predicated region
      $region17: #{edge_decoder.1} parent=11 // pred_check
        %p215 = pneg %p108
      $region18: #{edge_decoder.1} parent=11 // pred_check_branch
        %217 = sbr.rel (%p215) target = $region20
      $region19: #{edge_decoder.1} parent=11 // pred_region
        _
      $region20: #{edge_decoder.1} parent=11 // pred_fallthru
        _
      // Predicated region
      $region21: #{edge_decoder.1} parent=11 // pred_check
        %p218 = pneg %p129
      $region22: #{edge_decoder.1} parent=11 // pred_check_branch
        %220 = sbr.rel (%p218) target = $region24
      $region23: #{edge_decoder.1} parent=11 // pred_region
        _
      $region24: #{edge_decoder.1} parent=11 // pred_fallthru
        _
      // Predicated region
      $region25: #{edge_decoder.1} parent=11 // pred_check
        %p221 = pneg %p150
      $region26: #{edge_decoder.1} parent=11 // pred_check_branch
        %223 = sbr.rel (%p221) target = $region28
      $region27: #{edge_decoder.1} parent=11 // pred_region
        _
      $region28: #{edge_decoder.1} parent=11 // pred_fallthru
        _
      // Predicated region
      $region29: #{edge_decoder.1} parent=11 // pred_check
        %p224 = pneg %p171
      $region30: #{edge_decoder.1} parent=11 // pred_check_branch
        %226 = sbr.rel (%p224) target = $region32
      $region31: #{edge_decoder.1} parent=11 // pred_region
        _
      $region32: #{edge_decoder.1} parent=11 // pred_fallthru
        _
    $region12: #{edge_decoder.1} parent=5 // pred_fallthru
      _
    %p227 = scmp.lt.s32.totalorder %s14, 2
    // Predicated region
    $region33: #{edge_decoder.1} parent=5 // pred_check
      %p228 = pneg %p227
    $region34: #{edge_decoder.1} parent=5 // pred_check_branch
      %230 = sbr.rel (%p228) target = $region36
    $region35: #{edge_decoder.1} parent=5 // pred_region
      // Predicated region
      $region37: #{edge_decoder.1} parent=35 // pred_check
        %p231 = pneg %p34
      $region38: #{edge_decoder.1} parent=35 // pred_check_branch
        %233 = sbr.rel (%p231) target = $region40
      $region39: #{edge_decoder.1} parent=35 // pred_region
        %s234 = smul.u32 32, %s14
        %p235 = scmp.lt.s32.totalorder %s234, 63
        %s236 = scalar_select %p235, %s234, 63
        %s237 = smul.addr %s236, 4
        %s238 = scalar_lea.vmem %s0, %s237
        %s239 = smul.u32 32, %s14
      $region40: #{edge_decoder.1} parent=35 // pred_fallthru
        _
      // Predicated region
      $region41: #{edge_decoder.1} parent=35 // pred_check
        %p240 = pneg %p60
      $region42: #{edge_decoder.1} parent=35 // pred_check_branch
        %242 = sbr.rel (%p240) target = $region44
      $region43: #{edge_decoder.1} parent=35 // pred_region
        %s243 = smul.u32 32, %s14
        %p244 = scmp.lt.s32.totalorder %s243, 63
        %s245 = scalar_select %p244, %s243, 63
        %s246 = smul.addr %s245, 4
        %s247 = scalar_lea.vmem %s1, %s246
        %s248 = smul.u32 32, %s14
      $region44: #{edge_decoder.1} parent=35 // pred_fallthru
        _
    $region36: #{edge_decoder.1} parent=5 // pred_fallthru
      _
    %p249 = scmp.le.s32.totalorder 1, %s14
    %p250 = scmp.lt.s32.totalorder %s14, 3
    %p251 = pnand %p249, %p250
    %p252 = pneg %p251
    // Predicated region
    $region45: #{edge_decoder.1} parent=5 // pred_check
      _
    $region46: #{edge_decoder.1} parent=5 // pred_check_branch
      %254 = sbr.rel (%p251) target = $region48
    $region47: #{edge_decoder.1} parent=5 // pred_region
      %s255 = ssub.s32 %s14, 1
      %s256 = smul.u32 32, %s19
      %p257 = scmp.lt.s32.totalorder %s256, 63
      %s258 = scalar_select %p257, %s256, 63
      %s259 = smul.addr %s258, 4
      %s260 = scalar_lea.vmem %s0, %s259
      %p261 = pneg %p40
      %p262 = pneg %p37
      %s263 = smul.u32 32, %s19
      %p264 = scmp.lt.s32.totalorder %s263, 63
      %s265 = scalar_select %p264, %s263, 63
      %s266 = smul.addr %s265, 4
      %s267 = scalar_lea.vmem %s1, %s266
      %p268 = pneg %p66
      %p269 = pneg %p63
      %p270 = pneg %p87
      %p271 = pneg %p84
      %p272 = pneg %p108
      %p273 = pneg %p105
      %p274 = pneg %p129
      %p275 = pneg %p126
      %p276 = pneg %p150
      %p277 = pneg %p147
      %p278 = pneg %p171
      %p279 = pneg %p168
      %p280 = pneg %p197
      %p281 = pneg %p194
      %s282 = smul.u32 2, %s19
      %p283 = scmp.lt.s32.totalorder %s282, 3
      %s284 = scalar_select %p283, %s282, 3
      %s285 = scalar_lea.vmem %s7, %s284
      %s286 = smul.u32 32, %s19
      %p287 = scmp.lt.s32.totalorder %s286, 63
      %s288 = scalar_select %p287, %s286, 63
      %s289 = smul.addr %s288, 4
      %s290 = scalar_lea.vmem %s0, %s289
      %s291 = smul.u32 32, %s19
      %s292 = smul.u32 32, %s19
      %p293 = scmp.lt.s32.totalorder %s292, 63
      %s294 = scalar_select %p293, %s292, 63
      %s295 = smul.addr %s294, 4
      %s296 = scalar_lea.vmem %s1, %s295
      %s297 = smul.u32 32, %s19
      %s298 = smul.u32 2, %s19
      %p299 = scmp.lt.s32.totalorder %s298, 3
      %s300 = scalar_select %p299, %s298, 3
      %s301 = scalar_lea.vmem %s7, %s300
      %s302 = smul.u32 2, %s19
      %v304 = vld [vmem:[%s290] sm:$0xf]
      %v305 = vld [vmem:[%s290 + $0x4] sm:$0xf]
      %v306 = vld [vmem:[%s290 + $0x8] sm:$0xf]
      %v307 = vld [vmem:[%s290 + $0xc] sm:$0xf]
      %v308 = vld [vmem:[%s290 + $0x10] sm:$0xf]
      %v309 = vld [vmem:[%s290 + $0x14] sm:$0xf]
      %v310 = vld [vmem:[%s290 + $0x18] sm:$0xf]
      %v311 = vld [vmem:[%s290 + $0x1c] sm:$0xf]
      %v312 = vld [vmem:[%s290 + $0x20] sm:$0xf]
      %v313 = vld [vmem:[%s290 + $0x24] sm:$0xf]
      %v314 = vld [vmem:[%s290 + $0x28] sm:$0xf]
      %v315 = vld [vmem:[%s290 + $0x2c] sm:$0xf]
      %v316 = vld [vmem:[%s290 + $0x30] sm:$0xf]
      %v317 = vld [vmem:[%s290 + $0x34] sm:$0xf]
      %v318 = vld [vmem:[%s290 + $0x38] sm:$0xf]
      %v319 = vld [vmem:[%s290 + $0x3c] sm:$0xf]
      %v320 = vld [vmem:[%s290 + $0x40] sm:$0xf]
      %v321 = vld [vmem:[%s290 + $0x44] sm:$0xf]
      %v322 = vld [vmem:[%s290 + $0x48] sm:$0xf]
      %v323 = vld [vmem:[%s290 + $0x4c] sm:$0xf]
      %v324 = vld [vmem:[%s290 + $0x50] sm:$0xf]
      %v325 = vld [vmem:[%s290 + $0x54] sm:$0xf]
      %v326 = vld [vmem:[%s290 + $0x58] sm:$0xf]
      %v327 = vld [vmem:[%s290 + $0x5c] sm:$0xf]
      %v328 = vld [vmem:[%s290 + $0x60] sm:$0xf]
      %v329 = vld [vmem:[%s290 + $0x64] sm:$0xf]
      %v330 = vld [vmem:[%s290 + $0x68] sm:$0xf]
      %v331 = vld [vmem:[%s290 + $0x6c] sm:$0xf]
      %v332 = vld [vmem:[%s290 + $0x70] sm:$0xf]
      %v333 = vld [vmem:[%s290 + $0x74] sm:$0xf]
      %v334 = vld [vmem:[%s290 + $0x78] sm:$0xf]
      %v335 = vld [vmem:[%s290 + $0x7c] sm:$0xf]
      %v336 = vld [vmem:[%s2] sm:$0xf]
      %v337 = vld [vmem:[%s2 + $0x4] sm:$0xf]
      %v338 = vld [vmem:[%s2 + $0x8] sm:$0xf]
      %v339 = vld [vmem:[%s2 + $0xc] sm:$0xf]
      %v340 = vld [vmem:[%s2 + $0x10] sm:$0xf]
      %v341 = vld [vmem:[%s2 + $0x14] sm:$0xf]
      %v342 = vld [vmem:[%s2 + $0x18] sm:$0xf]
      %v343 = vld [vmem:[%s2 + $0x1c] sm:$0xf]
      %v344 = vld [vmem:[%s296] sm:$0xf]
      %v345 = vld [vmem:[%s296 + $0x4] sm:$0xf]
      %v346 = vld [vmem:[%s296 + $0x8] sm:$0xf]
      %v347 = vld [vmem:[%s296 + $0xc] sm:$0xf]
      %v348 = vld [vmem:[%s296 + $0x10] sm:$0xf]
      %v349 = vld [vmem:[%s296 + $0x14] sm:$0xf]
      %v350 = vld [vmem:[%s296 + $0x18] sm:$0xf]
      %v351 = vld [vmem:[%s296 + $0x1c] sm:$0xf]
      %v352 = vld [vmem:[%s296 + $0x20] sm:$0xf]
      %v353 = vld [vmem:[%s296 + $0x24] sm:$0xf]
      %v354 = vld [vmem:[%s296 + $0x28] sm:$0xf]
      %v355 = vld [vmem:[%s296 + $0x2c] sm:$0xf]
      %v356 = vld [vmem:[%s296 + $0x30] sm:$0xf]
      %v357 = vld [vmem:[%s296 + $0x34] sm:$0xf]
      %v358 = vld [vmem:[%s296 + $0x38] sm:$0xf]
      %v359 = vld [vmem:[%s296 + $0x3c] sm:$0xf]
      %v360 = vld [vmem:[%s296 + $0x40] sm:$0xf]
      %v361 = vld [vmem:[%s296 + $0x44] sm:$0xf]
      %v362 = vld [vmem:[%s296 + $0x48] sm:$0xf]
      %v363 = vld [vmem:[%s296 + $0x4c] sm:$0xf]
      %v364 = vld [vmem:[%s296 + $0x50] sm:$0xf]
      %v365 = vld [vmem:[%s296 + $0x54] sm:$0xf]
      %v366 = vld [vmem:[%s296 + $0x58] sm:$0xf]
      %v367 = vld [vmem:[%s296 + $0x5c] sm:$0xf]
      %v368 = vld [vmem:[%s296 + $0x60] sm:$0xf]
      %v369 = vld [vmem:[%s296 + $0x64] sm:$0xf]
      %v370 = vld [vmem:[%s296 + $0x68] sm:$0xf]
      %v371 = vld [vmem:[%s296 + $0x6c] sm:$0xf]
      %v372 = vld [vmem:[%s296 + $0x70] sm:$0xf]
      %v373 = vld [vmem:[%s296 + $0x74] sm:$0xf]
      %v374 = vld [vmem:[%s296 + $0x78] sm:$0xf]
      %v375 = vld [vmem:[%s296 + $0x7c] sm:$0xf]
      %v376 = vld [vmem:[%s3] sm:$0xf]
      %v377 = vld [vmem:[%s3 + $0x4] sm:$0xf]
      %v378 = vld [vmem:[%s3 + $0x8] sm:$0xf]
      %v379 = vld [vmem:[%s3 + $0xc] sm:$0xf]
      %v380 = vld [vmem:[%s3 + $0x10] sm:$0xf]
      %v381 = vld [vmem:[%s3 + $0x14] sm:$0xf]
      %v382 = vld [vmem:[%s3 + $0x18] sm:$0xf]
      %v383 = vld [vmem:[%s3 + $0x1c] sm:$0xf]
      %v416 = vunpack.c.l.b16 %v344
      %v417 = vunpack.c.l.b16 %v345
      %v418 = vunpack.c.l.b16 %v346
      %v419 = vunpack.c.l.b16 %v347
      %v420 = vunpack.c.l.b16 %v348
      %v421 = vunpack.c.l.b16 %v349
      %v422 = vunpack.c.l.b16 %v350
      %v423 = vunpack.c.l.b16 %v351
      %v424 = vunpack.c.l.b16 %v352
      %v425 = vunpack.c.l.b16 %v353
      %v426 = vunpack.c.l.b16 %v354
      %v427 = vunpack.c.l.b16 %v355
      %v428 = vunpack.c.l.b16 %v356
      %v429 = vunpack.c.l.b16 %v357
      %v430 = vunpack.c.l.b16 %v358
      %v431 = vunpack.c.l.b16 %v359
      %v432 = vunpack.c.l.b16 %v360
      %v433 = vunpack.c.l.b16 %v361
      %v434 = vunpack.c.l.b16 %v362
      %v435 = vunpack.c.l.b16 %v363
      %v436 = vunpack.c.l.b16 %v364
      %v437 = vunpack.c.l.b16 %v365
      %v438 = vunpack.c.l.b16 %v366
      %v439 = vunpack.c.l.b16 %v367
      %v440 = vunpack.c.l.b16 %v368
      %v441 = vunpack.c.l.b16 %v369
      %v442 = vunpack.c.l.b16 %v370
      %v443 = vunpack.c.l.b16 %v371
      %v444 = vunpack.c.l.b16 %v372
      %v445 = vunpack.c.l.b16 %v373
      %v446 = vunpack.c.l.b16 %v374
      %v447 = vunpack.c.l.b16 %v375
      %v448 = vpack.c.b16 %v417, %v416
      %v449 = vpack.c.b16 %v419, %v418
      %v450 = vpack.c.b16 %v421, %v420
      %v451 = vpack.c.b16 %v423, %v422
      %v452 = vpack.c.b16 %v425, %v424
      %v453 = vpack.c.b16 %v427, %v426
      %v454 = vpack.c.b16 %v429, %v428
      %v455 = vpack.c.b16 %v431, %v430
      %v456 = vpack.c.b16 %v433, %v432
      %v457 = vpack.c.b16 %v435, %v434
      %v458 = vpack.c.b16 %v437, %v436
      %v459 = vpack.c.b16 %v439, %v438
      %v460 = vpack.c.b16 %v441, %v440
      %v461 = vpack.c.b16 %v443, %v442
      %v462 = vpack.c.b16 %v445, %v444
      %v463 = vpack.c.b16 %v447, %v446
      %v472 = vunpack.c.l.b16 %v376
      %v473 = vunpack.c.l.b16 %v377
      %v474 = vunpack.c.l.b16 %v378
      %v475 = vunpack.c.l.b16 %v379
      %v476 = vunpack.c.l.b16 %v380
      %v477 = vunpack.c.l.b16 %v381
      %v478 = vunpack.c.l.b16 %v382
      %v479 = vunpack.c.l.b16 %v383
      %v480 = vpack.c.b16 %v473, %v472
      %v481 = vpack.c.b16 %v475, %v474
      %v482 = vpack.c.b16 %v477, %v476
      %v483 = vpack.c.b16 %v479, %v478
      %vm488 = vcmask 523264
      %v490 = vsel %vm488, %v448, 0
      %v493 = vsel %vm488, %v449, 0
      %v496 = vsel %vm488, %v450, 0
      %v499 = vsel %vm488, %v451, 0
      %v502 = vsel %vm488, %v452, 0
      %v505 = vsel %vm488, %v453, 0
      %v508 = vsel %vm488, %v454, 0
      %v511 = vsel %vm488, %v455, 0
      %v514 = vsel %vm488, %v456, 0
      %v517 = vsel %vm488, %v457, 0
      %v520 = vsel %vm488, %v458, 0
      %v523 = vsel %vm488, %v459, 0
      %v526 = vsel %vm488, %v460, 0
      %v529 = vsel %vm488, %v461, 0
      %v532 = vsel %vm488, %v462, 0
      %v535 = vsel %vm488, %v463, 0
      %537 = vmatprep.subr.bf16.mxu0 0
      %538 = vmatpush1.bf16.msra.mxu0 0
      %539 = vmatprep.subr.bf16.mxu0 0
      %540 = vmatpush1.bf16.msra.mxu0 0
      %541 = vmatprep.subr.bf16.mxu0 0
      %542 = vmatpush1.bf16.msra.mxu0 0
      %543 = vmatprep.subr.bf16.mxu0 0
      %544 = vmatpush1.bf16.msra.mxu0 0
      %545 = vmatprep.subr.bf16.mxu0 0
      %546 = vmatpush1.bf16.msra.mxu0 %v483
      %547 = vmatprep.subr.bf16.mxu0 0
      %548 = vmatpush1.bf16.msra.mxu0 %v482
      %549 = vmatprep.subr.bf16.mxu0 0
      %550 = vmatpush1.bf16.msra.mxu0 %v481
      %551 = vmatprep.subr.bf16.mxu0 0
      %552 = vmatpush1.bf16.msra.mxu0 %v480
      %553 = vmatprep.subr.bf16.mxu0 0
      %554 = vmatpush2.bf16.msra.mxu0 0
      %555 = vmatprep.subr.bf16.mxu0 0
      %556 = vmatpush2.bf16.msra.mxu0 0
      %557 = vmatprep.subr.bf16.mxu0 0
      %558 = vmatpush2.bf16.msra.mxu0 0
      %559 = vmatprep.subr.bf16.mxu0 0
      %560 = vmatpush2.bf16.msra.mxu0 0
      %561 = vmatprep.subr.bf16.mxu0 0
      %562 = vmatpush2.bf16.msra.mxu0 0
      %563 = vmatprep.subr.bf16.mxu0 0
      %564 = vmatpush2.bf16.msra.mxu0 0
      %565 = vmatprep.subr.bf16.mxu0 0
      %566 = vmatpush2.bf16.msra.mxu0 0
      %567 = vmatprep.subr.bf16.mxu0 0
      %568 = vmatpush2.bf16.msra.mxu0 0
      %569 = vmatprep.mubr.bf16.mxu0 0
      %570 = vmatmul.mubr.bf16.gmra.mxu0 %v490
      %v571 = vpop.f32.mrf.mxu0
      %v572 = vadd.f32 0.0, %v571
      %v573 = vpop.f32.mrf.mxu0
      %v574 = vpop.f32.mrf.mxu0
      %v575 = vadd.f32 0.0, %v574
      %v576 = vpop.f32.mrf.mxu0
      %577 = vmatprep.mubr.bf16.mxu0 0
      %578 = vmatmul.mubr.bf16.gmra.mxu0 %v493
      %v579 = vpop.f32.mrf.mxu0
      %v580 = vadd.f32 0.0, %v579
      %v581 = vpop.f32.mrf.mxu0
      %v582 = vpop.f32.mrf.mxu0
      %v583 = vadd.f32 0.0, %v582
      %v584 = vpop.f32.mrf.mxu0
      %585 = vmatprep.mubr.bf16.mxu0 0
      %586 = vmatmul.mubr.bf16.gmra.mxu0 %v496
      %v587 = vpop.f32.mrf.mxu0
      %v588 = vadd.f32 0.0, %v587
      %v589 = vpop.f32.mrf.mxu0
      %v590 = vpop.f32.mrf.mxu0
      %v591 = vadd.f32 0.0, %v590
      %v592 = vpop.f32.mrf.mxu0
      %593 = vmatprep.mubr.bf16.mxu0 0
      %594 = vmatmul.mubr.bf16.gmra.mxu0 %v499
      %v595 = vpop.f32.mrf.mxu0
      %v596 = vadd.f32 0.0, %v595
      %v597 = vpop.f32.mrf.mxu0
      %v598 = vpop.f32.mrf.mxu0
      %v599 = vadd.f32 0.0, %v598
      %v600 = vpop.f32.mrf.mxu0
      %601 = vmatprep.mubr.bf16.mxu0 0
      %602 = vmatmul.mubr.bf16.gmra.mxu0 %v502
      %v603 = vpop.f32.mrf.mxu0
      %v604 = vadd.f32 0.0, %v603
      %v605 = vpop.f32.mrf.mxu0
      %v606 = vpop.f32.mrf.mxu0
      %v607 = vadd.f32 0.0, %v606
      %v608 = vpop.f32.mrf.mxu0
      %609 = vmatprep.mubr.bf16.mxu0 0
      %610 = vmatmul.mubr.bf16.gmra.mxu0 %v505
      %v611 = vpop.f32.mrf.mxu0
      %v612 = vadd.f32 0.0, %v611
      %v613 = vpop.f32.mrf.mxu0
      %v614 = vpop.f32.mrf.mxu0
      %v615 = vadd.f32 0.0, %v614
      %v616 = vpop.f32.mrf.mxu0
      %617 = vmatprep.mubr.bf16.mxu0 0
      %618 = vmatmul.mubr.bf16.gmra.mxu0 %v508
      %v619 = vpop.f32.mrf.mxu0
      %v620 = vadd.f32 0.0, %v619
      %v621 = vpop.f32.mrf.mxu0
      %v622 = vpop.f32.mrf.mxu0
      %v623 = vadd.f32 0.0, %v622
      %v624 = vpop.f32.mrf.mxu0
      %625 = vmatprep.mubr.bf16.mxu0 0
      %626 = vmatmul.mubr.bf16.gmra.mxu0 %v511
      %v627 = vpop.f32.mrf.mxu0
      %v628 = vadd.f32 0.0, %v627
      %v629 = vpop.f32.mrf.mxu0
      %v630 = vpop.f32.mrf.mxu0
      %v631 = vadd.f32 0.0, %v630
      %v632 = vpop.f32.mrf.mxu0
      %633 = vmatprep.mubr.bf16.mxu0 0
      %634 = vmatmul.mubr.bf16.gmra.mxu0 %v514
      %v635 = vpop.f32.mrf.mxu0
      %v636 = vadd.f32 0.0, %v635
      %v637 = vpop.f32.mrf.mxu0
      %v638 = vpop.f32.mrf.mxu0
      %v639 = vadd.f32 0.0, %v638
      %v640 = vpop.f32.mrf.mxu0
      %641 = vmatprep.mubr.bf16.mxu0 0
      %642 = vmatmul.mubr.bf16.gmra.mxu0 %v517
      %v643 = vpop.f32.mrf.mxu0
      %v644 = vadd.f32 0.0, %v643
      %v645 = vpop.f32.mrf.mxu0
      %v646 = vpop.f32.mrf.mxu0
      %v647 = vadd.f32 0.0, %v646
      %v648 = vpop.f32.mrf.mxu0
      %649 = vmatprep.mubr.bf16.mxu0 0
      %650 = vmatmul.mubr.bf16.gmra.mxu0 %v520
      %v651 = vpop.f32.mrf.mxu0
      %v652 = vadd.f32 0.0, %v651
      %v653 = vpop.f32.mrf.mxu0
      %v654 = vpop.f32.mrf.mxu0
      %v655 = vadd.f32 0.0, %v654
      %v656 = vpop.f32.mrf.mxu0
      %657 = vmatprep.mubr.bf16.mxu0 0
      %658 = vmatmul.mubr.bf16.gmra.mxu0 %v523
      %v659 = vpop.f32.mrf.mxu0
      %v660 = vadd.f32 0.0, %v659
      %v661 = vpop.f32.mrf.mxu0
      %v662 = vpop.f32.mrf.mxu0
      %v663 = vadd.f32 0.0, %v662
      %v664 = vpop.f32.mrf.mxu0
      %665 = vmatprep.mubr.bf16.mxu0 0
      %666 = vmatmul.mubr.bf16.gmra.mxu0 %v526
      %v667 = vpop.f32.mrf.mxu0
      %v668 = vadd.f32 0.0, %v667
      %v669 = vpop.f32.mrf.mxu0
      %v670 = vpop.f32.mrf.mxu0
      %v671 = vadd.f32 0.0, %v670
      %v672 = vpop.f32.mrf.mxu0
      %673 = vmatprep.mubr.bf16.mxu0 0
      %674 = vmatmul.mubr.bf16.gmra.mxu0 %v529
      %v675 = vpop.f32.mrf.mxu0
      %v676 = vadd.f32 0.0, %v675
      %v677 = vpop.f32.mrf.mxu0
      %v678 = vpop.f32.mrf.mxu0
      %v679 = vadd.f32 0.0, %v678
      %v680 = vpop.f32.mrf.mxu0
      %681 = vmatprep.mubr.bf16.mxu0 0
      %682 = vmatmul.mubr.bf16.gmra.mxu0 %v532
      %v683 = vpop.f32.mrf.mxu0
      %v684 = vadd.f32 0.0, %v683
      %v685 = vpop.f32.mrf.mxu0
      %v686 = vpop.f32.mrf.mxu0
      %v687 = vadd.f32 0.0, %v686
      %v688 = vpop.f32.mrf.mxu0
      %689 = vmatprep.mubr.bf16.mxu0 0
      %690 = vmatmul.mubr.bf16.gmra.mxu0 %v535
      %v691 = vpop.f32.mrf.mxu0
      %v692 = vadd.f32 0.0, %v691
      %v693 = vpop.f32.mrf.mxu0
      %v694 = vpop.f32.mrf.mxu0
      %v695 = vadd.f32 0.0, %v694
      %v696 = vpop.f32.mrf.mxu0
      %697 = vdwg.mxu0
      %v730 = vunpack.c.l.b16 %v304
      %v731 = vunpack.c.l.b16 %v305
      %v732 = vunpack.c.l.b16 %v306
      %v733 = vunpack.c.l.b16 %v307
      %v734 = vunpack.c.l.b16 %v308
      %v735 = vunpack.c.l.b16 %v309
      %v736 = vunpack.c.l.b16 %v310
      %v737 = vunpack.c.l.b16 %v311
      %v738 = vunpack.c.l.b16 %v312
      %v739 = vunpack.c.l.b16 %v313
      %v740 = vunpack.c.l.b16 %v314
      %v741 = vunpack.c.l.b16 %v315
      %v742 = vunpack.c.l.b16 %v316
      %v743 = vunpack.c.l.b16 %v317
      %v744 = vunpack.c.l.b16 %v318
      %v745 = vunpack.c.l.b16 %v319
      %v746 = vunpack.c.l.b16 %v320
      %v747 = vunpack.c.l.b16 %v321
      %v748 = vunpack.c.l.b16 %v322
      %v749 = vunpack.c.l.b16 %v323
      %v750 = vunpack.c.l.b16 %v324
      %v751 = vunpack.c.l.b16 %v325
      %v752 = vunpack.c.l.b16 %v326
      %v753 = vunpack.c.l.b16 %v327
      %v754 = vunpack.c.l.b16 %v328
      %v755 = vunpack.c.l.b16 %v329
      %v756 = vunpack.c.l.b16 %v330
      %v757 = vunpack.c.l.b16 %v331
      %v758 = vunpack.c.l.b16 %v332
      %v759 = vunpack.c.l.b16 %v333
      %v760 = vunpack.c.l.b16 %v334
      %v761 = vunpack.c.l.b16 %v335
      %v762 = vpack.c.b16 %v731, %v730
      %v763 = vpack.c.b16 %v733, %v732
      %v764 = vpack.c.b16 %v735, %v734
      %v765 = vpack.c.b16 %v737, %v736
      %v766 = vpack.c.b16 %v739, %v738
      %v767 = vpack.c.b16 %v741, %v740
      %v768 = vpack.c.b16 %v743, %v742
      %v769 = vpack.c.b16 %v745, %v744
      %v770 = vpack.c.b16 %v747, %v746
      %v771 = vpack.c.b16 %v749, %v748
      %v772 = vpack.c.b16 %v751, %v750
      %v773 = vpack.c.b16 %v753, %v752
      %v774 = vpack.c.b16 %v755, %v754
      %v775 = vpack.c.b16 %v757, %v756
      %v776 = vpack.c.b16 %v759, %v758
      %v777 = vpack.c.b16 %v761, %v760
      %v786 = vunpack.c.l.b16 %v336
      %v787 = vunpack.c.l.b16 %v337
      %v788 = vunpack.c.l.b16 %v338
      %v789 = vunpack.c.l.b16 %v339
      %v790 = vunpack.c.l.b16 %v340
      %v791 = vunpack.c.l.b16 %v341
      %v792 = vunpack.c.l.b16 %v342
      %v793 = vunpack.c.l.b16 %v343
      %v794 = vpack.c.b16 %v787, %v786
      %v795 = vpack.c.b16 %v789, %v788
      %v796 = vpack.c.b16 %v791, %v790
      %v797 = vpack.c.b16 %v793, %v792
      %v803 = vsel %vm488, %v762, 0
      %v806 = vsel %vm488, %v763, 0
      %v809 = vsel %vm488, %v764, 0
      %v812 = vsel %vm488, %v765, 0
      %v815 = vsel %vm488, %v766, 0
      %v818 = vsel %vm488, %v767, 0
      %v821 = vsel %vm488, %v768, 0
      %v824 = vsel %vm488, %v769, 0
      %v827 = vsel %vm488, %v770, 0
      %v830 = vsel %vm488, %v771, 0
      %v833 = vsel %vm488, %v772, 0
      %v836 = vsel %vm488, %v773, 0
      %v839 = vsel %vm488, %v774, 0
      %v842 = vsel %vm488, %v775, 0
      %v845 = vsel %vm488, %v776, 0
      %v848 = vsel %vm488, %v777, 0
      %850 = vmatprep.subr.bf16.mxu0 0
      %851 = vmatpush1.bf16.msra.mxu0 0
      %852 = vmatprep.subr.bf16.mxu0 0
      %853 = vmatpush1.bf16.msra.mxu0 0
      %854 = vmatprep.subr.bf16.mxu0 0
      %855 = vmatpush1.bf16.msra.mxu0 0
      %856 = vmatprep.subr.bf16.mxu0 0
      %857 = vmatpush1.bf16.msra.mxu0 0
      %858 = vmatprep.subr.bf16.mxu0 0
      %859 = vmatpush1.bf16.msra.mxu0 %v797
      %860 = vmatprep.subr.bf16.mxu0 0
      %861 = vmatpush1.bf16.msra.mxu0 %v796
      %862 = vmatprep.subr.bf16.mxu0 0
      %863 = vmatpush1.bf16.msra.mxu0 %v795
      %864 = vmatprep.subr.bf16.mxu0 0
      %865 = vmatpush1.bf16.msra.mxu0 %v794
      %866 = vmatprep.subr.bf16.mxu0 0
      %867 = vmatpush2.bf16.msra.mxu0 0
      %868 = vmatprep.subr.bf16.mxu0 0
      %869 = vmatpush2.bf16.msra.mxu0 0
      %870 = vmatprep.subr.bf16.mxu0 0
      %871 = vmatpush2.bf16.msra.mxu0 0
      %872 = vmatprep.subr.bf16.mxu0 0
      %873 = vmatpush2.bf16.msra.mxu0 0
      %874 = vmatprep.subr.bf16.mxu0 0
      %875 = vmatpush2.bf16.msra.mxu0 0
      %876 = vmatprep.subr.bf16.mxu0 0
      %877 = vmatpush2.bf16.msra.mxu0 0
      %878 = vmatprep.subr.bf16.mxu0 0
      %879 = vmatpush2.bf16.msra.mxu0 0
      %880 = vmatprep.subr.bf16.mxu0 0
      %881 = vmatpush2.bf16.msra.mxu0 0
      %882 = vmatprep.mubr.bf16.mxu0 0
      %883 = vmatmul.mubr.bf16.gmra.mxu0 %v803
      %v884 = vpop.f32.mrf.mxu0
      %v885 = vadd.f32 %v572, %v884
      %v886 = vpop.f32.mrf.mxu0
      %v887 = vpop.f32.mrf.mxu0
      %v888 = vadd.f32 %v575, %v887
      %v889 = vpop.f32.mrf.mxu0
      %890 = vmatprep.mubr.bf16.mxu0 0
      %891 = vmatmul.mubr.bf16.gmra.mxu0 %v806
      %v892 = vpop.f32.mrf.mxu0
      %v893 = vadd.f32 %v580, %v892
      %v894 = vpop.f32.mrf.mxu0
      %v895 = vpop.f32.mrf.mxu0
      %v896 = vadd.f32 %v583, %v895
      %v897 = vpop.f32.mrf.mxu0
      %898 = vmatprep.mubr.bf16.mxu0 0
      %899 = vmatmul.mubr.bf16.gmra.mxu0 %v809
      %v900 = vpop.f32.mrf.mxu0
      %v901 = vadd.f32 %v588, %v900
      %v902 = vpop.f32.mrf.mxu0
      %v903 = vpop.f32.mrf.mxu0
      %v904 = vadd.f32 %v591, %v903
      %v905 = vpop.f32.mrf.mxu0
      %906 = vmatprep.mubr.bf16.mxu0 0
      %907 = vmatmul.mubr.bf16.gmra.mxu0 %v812
      %v908 = vpop.f32.mrf.mxu0
      %v909 = vadd.f32 %v596, %v908
      %v910 = vpop.f32.mrf.mxu0
      %v911 = vpop.f32.mrf.mxu0
      %v912 = vadd.f32 %v599, %v911
      %v913 = vpop.f32.mrf.mxu0
      %914 = vmatprep.mubr.bf16.mxu0 0
      %915 = vmatmul.mubr.bf16.gmra.mxu0 %v815
      %v916 = vpop.f32.mrf.mxu0
      %v917 = vadd.f32 %v604, %v916
      %v918 = vpop.f32.mrf.mxu0
      %v919 = vpop.f32.mrf.mxu0
      %v920 = vadd.f32 %v607, %v919
      %v921 = vpop.f32.mrf.mxu0
      %922 = vmatprep.mubr.bf16.mxu0 0
      %923 = vmatmul.mubr.bf16.gmra.mxu0 %v818
      %v924 = vpop.f32.mrf.mxu0
      %v925 = vadd.f32 %v612, %v924
      %v926 = vpop.f32.mrf.mxu0
      %v927 = vpop.f32.mrf.mxu0
      %v928 = vadd.f32 %v615, %v927
      %v929 = vpop.f32.mrf.mxu0
      %930 = vmatprep.mubr.bf16.mxu0 0
      %931 = vmatmul.mubr.bf16.gmra.mxu0 %v821
      %v932 = vpop.f32.mrf.mxu0
      %v933 = vadd.f32 %v620, %v932
      %v934 = vpop.f32.mrf.mxu0
      %v935 = vpop.f32.mrf.mxu0
      %v936 = vadd.f32 %v623, %v935
      %v937 = vpop.f32.mrf.mxu0
      %938 = vmatprep.mubr.bf16.mxu0 0
      %939 = vmatmul.mubr.bf16.gmra.mxu0 %v824
      %v940 = vpop.f32.mrf.mxu0
      %v941 = vadd.f32 %v628, %v940
      %v942 = vpop.f32.mrf.mxu0
      %v943 = vpop.f32.mrf.mxu0
      %v944 = vadd.f32 %v631, %v943
      %v945 = vpop.f32.mrf.mxu0
      %946 = vmatprep.mubr.bf16.mxu0 0
      %947 = vmatmul.mubr.bf16.gmra.mxu0 %v827
      %v948 = vpop.f32.mrf.mxu0
      %v949 = vadd.f32 %v636, %v948
      %v950 = vpop.f32.mrf.mxu0
      %v951 = vpop.f32.mrf.mxu0
      %v952 = vadd.f32 %v639, %v951
      %v953 = vpop.f32.mrf.mxu0
      %954 = vmatprep.mubr.bf16.mxu0 0
      %955 = vmatmul.mubr.bf16.gmra.mxu0 %v830
      %v956 = vpop.f32.mrf.mxu0
      %v957 = vadd.f32 %v644, %v956
      %v958 = vpop.f32.mrf.mxu0
      %v959 = vpop.f32.mrf.mxu0
      %v960 = vadd.f32 %v647, %v959
      %v961 = vpop.f32.mrf.mxu0
      %962 = vmatprep.mubr.bf16.mxu0 0
      %963 = vmatmul.mubr.bf16.gmra.mxu0 %v833
      %v964 = vpop.f32.mrf.mxu0
      %v965 = vadd.f32 %v652, %v964
      %v966 = vpop.f32.mrf.mxu0
      %v967 = vpop.f32.mrf.mxu0
      %v968 = vadd.f32 %v655, %v967
      %v969 = vpop.f32.mrf.mxu0
      %970 = vmatprep.mubr.bf16.mxu0 0
      %971 = vmatmul.mubr.bf16.gmra.mxu0 %v836
      %v972 = vpop.f32.mrf.mxu0
      %v973 = vadd.f32 %v660, %v972
      %v974 = vpop.f32.mrf.mxu0
      %v975 = vpop.f32.mrf.mxu0
      %v976 = vadd.f32 %v663, %v975
      %v977 = vpop.f32.mrf.mxu0
      %978 = vmatprep.mubr.bf16.mxu0 0
      %979 = vmatmul.mubr.bf16.gmra.mxu0 %v839
      %v980 = vpop.f32.mrf.mxu0
      %v981 = vadd.f32 %v668, %v980
      %v982 = vpop.f32.mrf.mxu0
      %v983 = vpop.f32.mrf.mxu0
      %v984 = vadd.f32 %v671, %v983
      %v985 = vpop.f32.mrf.mxu0
      %986 = vmatprep.mubr.bf16.mxu0 0
      %987 = vmatmul.mubr.bf16.gmra.mxu0 %v842
      %v988 = vpop.f32.mrf.mxu0
      %v989 = vadd.f32 %v676, %v988
      %v990 = vpop.f32.mrf.mxu0
      %v991 = vpop.f32.mrf.mxu0
      %v992 = vadd.f32 %v679, %v991
      %v993 = vpop.f32.mrf.mxu0
      %994 = vmatprep.mubr.bf16.mxu0 0
      %995 = vmatmul.mubr.bf16.gmra.mxu0 %v845
      %v996 = vpop.f32.mrf.mxu0
      %v997 = vadd.f32 %v684, %v996
      %v998 = vpop.f32.mrf.mxu0
      %v999 = vpop.f32.mrf.mxu0
      %v1000 = vadd.f32 %v687, %v999
      %v1001 = vpop.f32.mrf.mxu0
      %1002 = vmatprep.mubr.bf16.mxu0 0
      %1003 = vmatmul.mubr.bf16.gmra.mxu0 %v848
      %v1004 = vpop.f32.mrf.mxu0
      %v1005 = vadd.f32 %v692, %v1004
      %v1006 = vpop.f32.mrf.mxu0
      %v1007 = vpop.f32.mrf.mxu0
      %v1008 = vadd.f32 %v695, %v1007
      %v1009 = vpop.f32.mrf.mxu0
      %1010 = vdwg.mxu0
      %v1011 = vld [vmem:[%s4] sm:$0x1]
      %v1013 = vlaneseq
      %v1014 = vshrl.u32 %v1013, 7
      %v1015 = vsub.s32 0, %v1014
      %v1016 = vrot.slane %v1011, %v1015
      %v1018 = vadd.f32 %v885, %v1016
      %v1019 = vadd.f32 %v888, %v1016
      %v1020 = vadd.f32 %v893, %v1016
      %v1021 = vadd.f32 %v896, %v1016
      %v1022 = vadd.f32 %v901, %v1016
      %v1023 = vadd.f32 %v904, %v1016
      %v1024 = vadd.f32 %v909, %v1016
      %v1025 = vadd.f32 %v912, %v1016
      %v1026 = vadd.f32 %v917, %v1016
      %v1027 = vadd.f32 %v920, %v1016
      %v1028 = vadd.f32 %v925, %v1016
      %v1029 = vadd.f32 %v928, %v1016
      %v1030 = vadd.f32 %v933, %v1016
      %v1031 = vadd.f32 %v936, %v1016
      %v1032 = vadd.f32 %v941, %v1016
      %v1033 = vadd.f32 %v944, %v1016
      %v1034 = vadd.f32 %v949, %v1016
      %v1035 = vadd.f32 %v952, %v1016
      %v1036 = vadd.f32 %v957, %v1016
      %v1037 = vadd.f32 %v960, %v1016
      %v1038 = vadd.f32 %v965, %v1016
      %v1039 = vadd.f32 %v968, %v1016
      %v1040 = vadd.f32 %v973, %v1016
      %v1041 = vadd.f32 %v976, %v1016
      %v1042 = vadd.f32 %v981, %v1016
      %v1043 = vadd.f32 %v984, %v1016
      %v1044 = vadd.f32 %v989, %v1016
      %v1045 = vadd.f32 %v992, %v1016
      %v1046 = vadd.f32 %v997, %v1016
      %v1047 = vadd.f32 %v1000, %v1016
      %v1048 = vadd.f32 %v1005, %v1016
      %v1049 = vadd.f32 %v1008, %v1016
      %v1050 = vmax.f32 %v1018, 0.0
      %v1051 = vmax.f32 %v1019, 0.0
      %v1052 = vmax.f32 %v1020, 0.0
      %v1053 = vmax.f32 %v1021, 0.0
      %v1054 = vmax.f32 %v1022, 0.0
      %v1055 = vmax.f32 %v1023, 0.0
      %v1056 = vmax.f32 %v1024, 0.0
      %v1057 = vmax.f32 %v1025, 0.0
      %v1058 = vmax.f32 %v1026, 0.0
      %v1059 = vmax.f32 %v1027, 0.0
      %v1060 = vmax.f32 %v1028, 0.0
      %v1061 = vmax.f32 %v1029, 0.0
      %v1062 = vmax.f32 %v1030, 0.0
      %v1063 = vmax.f32 %v1031, 0.0
      %v1064 = vmax.f32 %v1032, 0.0
      %v1065 = vmax.f32 %v1033, 0.0
      %v1066 = vmax.f32 %v1034, 0.0
      %v1067 = vmax.f32 %v1035, 0.0
      %v1068 = vmax.f32 %v1036, 0.0
      %v1069 = vmax.f32 %v1037, 0.0
      %v1070 = vmax.f32 %v1038, 0.0
      %v1071 = vmax.f32 %v1039, 0.0
      %v1072 = vmax.f32 %v1040, 0.0
      %v1073 = vmax.f32 %v1041, 0.0
      %v1074 = vmax.f32 %v1042, 0.0
      %v1075 = vmax.f32 %v1043, 0.0
      %v1076 = vmax.f32 %v1044, 0.0
      %v1077 = vmax.f32 %v1045, 0.0
      %v1078 = vmax.f32 %v1046, 0.0
      %v1079 = vmax.f32 %v1047, 0.0
      %v1080 = vmax.f32 %v1048, 0.0
      %v1081 = vmax.f32 %v1049, 0.0
      %v1082 = vld [vmem:[%s5] sm:$0x1]
      %v1084 = vlaneseq
      %v1085 = vshrl.u32 %v1084, 7
      %v1086 = vsub.s32 0, %v1085
      %v1087 = vrot.slane %v1082, %v1086
      %v1089 = vmul.f32 %v1050, %v1087
      %v1090 = vmul.f32 %v1051, %v1087
      %v1091 = vmul.f32 %v1052, %v1087
      %v1092 = vmul.f32 %v1053, %v1087
      %v1093 = vmul.f32 %v1054, %v1087
      %v1094 = vmul.f32 %v1055, %v1087
      %v1095 = vmul.f32 %v1056, %v1087
      %v1096 = vmul.f32 %v1057, %v1087
      %v1097 = vmul.f32 %v1058, %v1087
      %v1098 = vmul.f32 %v1059, %v1087
      %v1099 = vmul.f32 %v1060, %v1087
      %v1100 = vmul.f32 %v1061, %v1087
      %v1101 = vmul.f32 %v1062, %v1087
      %v1102 = vmul.f32 %v1063, %v1087
      %v1103 = vmul.f32 %v1064, %v1087
      %v1104 = vmul.f32 %v1065, %v1087
      %v1105 = vmul.f32 %v1066, %v1087
      %v1106 = vmul.f32 %v1067, %v1087
      %v1107 = vmul.f32 %v1068, %v1087
      %v1108 = vmul.f32 %v1069, %v1087
      %v1109 = vmul.f32 %v1070, %v1087
      %v1110 = vmul.f32 %v1071, %v1087
      %v1111 = vmul.f32 %v1072, %v1087
      %v1112 = vmul.f32 %v1073, %v1087
      %v1113 = vmul.f32 %v1074, %v1087
      %v1114 = vmul.f32 %v1075, %v1087
      %v1115 = vmul.f32 %v1076, %v1087
      %v1116 = vmul.f32 %v1077, %v1087
      %v1117 = vmul.f32 %v1078, %v1087
      %v1118 = vmul.f32 %v1079, %v1087
      %v1119 = vmul.f32 %v1080, %v1087
      %v1120 = vmul.f32 %v1081, %v1087
      %1121 = vxpose.xlu0.b32.start [1/16] %v1089, 128
      %1122 = vxpose.xlu0.b32.cont [2/16] %v1090, 128
      %1123 = vxpose.xlu0.b32.cont [3/16] %v1091, 128
      %1124 = vxpose.xlu0.b32.cont [4/16] %v1092, 128
      %1125 = vxpose.xlu0.b32.cont [5/16] %v1093, 128
      %1126 = vxpose.xlu0.b32.cont [6/16] %v1094, 128
      %1127 = vxpose.xlu0.b32.cont [7/16] %v1095, 128
      %1128 = vxpose.xlu0.b32.cont [8/16] %v1096, 128
      %1129 = vxpose.xlu0.b32.cont [9/16] %v1097, 128
      %1130 = vxpose.xlu0.b32.cont [10/16] %v1098, 128
      %1131 = vxpose.xlu0.b32.cont [11/16] %v1099, 128
      %1132 = vxpose.xlu0.b32.cont [12/16] %v1100, 128
      %1133 = vxpose.xlu0.b32.cont [13/16] %v1101, 128
      %1134 = vxpose.xlu0.b32.cont [14/16] %v1102, 128
      %1135 = vxpose.xlu0.b32.cont [15/16] %v1103, 128
      %1136 = vxpose.xlu0.b32.end [16/16] %v1104, 128
      %v1137 = vpop.trf.xlu0
      %v1138 = vpop.trf.xlu0
      %v1139 = vpop.trf.xlu0
      %v1140 = vpop.trf.xlu0
      %v1141 = vpop.trf.xlu0
      %v1142 = vpop.trf.xlu0
      %v1143 = vpop.trf.xlu0
      %v1144 = vpop.trf.xlu0
      %v1145 = vpop.trf.xlu0
      %v1146 = vpop.trf.xlu0
      %v1147 = vpop.trf.xlu0
      %v1148 = vpop.trf.xlu0
      %v1149 = vpop.trf.xlu0
      %v1150 = vpop.trf.xlu0
      %v1151 = vpop.trf.xlu0
      %v1152 = vpop.trf.xlu0
      %1153 = vxpose.xlu0.b32.start [1/16] %v1105, 128
      %1154 = vxpose.xlu0.b32.cont [2/16] %v1106, 128
      %1155 = vxpose.xlu0.b32.cont [3/16] %v1107, 128
      %1156 = vxpose.xlu0.b32.cont [4/16] %v1108, 128
      %1157 = vxpose.xlu0.b32.cont [5/16] %v1109, 128
      %1158 = vxpose.xlu0.b32.cont [6/16] %v1110, 128
      %1159 = vxpose.xlu0.b32.cont [7/16] %v1111, 128
      %1160 = vxpose.xlu0.b32.cont [8/16] %v1112, 128
      %1161 = vxpose.xlu0.b32.cont [9/16] %v1113, 128
      %1162 = vxpose.xlu0.b32.cont [10/16] %v1114, 128
      %1163 = vxpose.xlu0.b32.cont [11/16] %v1115, 128
      %1164 = vxpose.xlu0.b32.cont [12/16] %v1116, 128
      %1165 = vxpose.xlu0.b32.cont [13/16] %v1117, 128
      %1166 = vxpose.xlu0.b32.cont [14/16] %v1118, 128
      %1167 = vxpose.xlu0.b32.cont [15/16] %v1119, 128
      %1168 = vxpose.xlu0.b32.end [16/16] %v1120, 128
      %v1169 = vpop.trf.xlu0
      %v1170 = vpop.trf.xlu0
      %v1171 = vpop.trf.xlu0
      %v1172 = vpop.trf.xlu0
      %v1173 = vpop.trf.xlu0
      %v1174 = vpop.trf.xlu0
      %v1175 = vpop.trf.xlu0
      %v1176 = vpop.trf.xlu0
      %v1177 = vpop.trf.xlu0
      %v1178 = vpop.trf.xlu0
      %v1179 = vpop.trf.xlu0
      %v1180 = vpop.trf.xlu0
      %v1181 = vpop.trf.xlu0
      %v1182 = vpop.trf.xlu0
      %v1183 = vpop.trf.xlu0
      %v1184 = vpop.trf.xlu0
      %v1185 = vadd.f32 %v1137, %v1138
      %v1186 = vadd.f32 %v1185, %v1139
      %v1187 = vadd.f32 %v1186, %v1140
      %v1188 = vadd.f32 %v1187, %v1141
      %v1189 = vadd.f32 %v1188, %v1142
      %v1190 = vadd.f32 %v1189, %v1143
      %v1191 = vadd.f32 %v1190, %v1144
      %v1192 = vadd.f32 %v1191, %v1145
      %v1193 = vadd.f32 %v1192, %v1146
      %v1194 = vadd.f32 %v1193, %v1147
      %v1195 = vadd.f32 %v1194, %v1148
      %v1196 = vadd.f32 %v1195, %v1149
      %v1197 = vadd.f32 %v1196, %v1150
      %v1198 = vadd.f32 %v1197, %v1151
      %v1199 = vadd.f32 %v1198, %v1152
      %v1200 = vrot.slane %v1199, 4
      %v1201 = vadd.f32 %v1199, %v1200
      %v1202 = vrot.slane %v1201, 2
      %v1203 = vadd.f32 %v1201, %v1202
      %v1204 = vrot.slane %v1203, 1
      %v1205 = vadd.f32 %v1203, %v1204
      %v1206 = vadd.f32 %v1169, %v1170
      %v1207 = vadd.f32 %v1206, %v1171
      %v1208 = vadd.f32 %v1207, %v1172
      %v1209 = vadd.f32 %v1208, %v1173
      %v1210 = vadd.f32 %v1209, %v1174
      %v1211 = vadd.f32 %v1210, %v1175
      %v1212 = vadd.f32 %v1211, %v1176
      %v1213 = vadd.f32 %v1212, %v1177
      %v1214 = vadd.f32 %v1213, %v1178
      %v1215 = vadd.f32 %v1214, %v1179
      %v1216 = vadd.f32 %v1215, %v1180
      %v1217 = vadd.f32 %v1216, %v1181
      %v1218 = vadd.f32 %v1217, %v1182
      %v1219 = vadd.f32 %v1218, %v1183
      %v1220 = vadd.f32 %v1219, %v1184
      %v1221 = vrot.slane %v1220, 4
      %v1222 = vadd.f32 %v1220, %v1221
      %v1223 = vrot.slane %v1222, 2
      %v1224 = vadd.f32 %v1222, %v1223
      %v1225 = vrot.slane %v1224, 1
      %v1226 = vadd.f32 %v1224, %v1225
      %s1227 = sld [smem:[#allocation2]]
      %v1228 = vstv %s1227
      %v1229 = vadd.f32 %v1205, %v1228
      %v1230 = vadd.f32 %v1226, %v1228
      %v1233 = vcombine.low %v1229, %v1230
      %v1235 = vunpack.c.l.s4 1966171168
      %v1236 = vunpack.c.0.s8 %v1235
      %v1237 = vlaneseq
      %v1238 = vshrl.u32 %v1237, 7
      %v1239 = vsub.s32 %v1236, %v1238
      %v1240 = vrot.slane %v1233, %v1239
      %v1242 = vunpack.c.l.s4 1966171168
      %v1243 = vunpack.c.0.s8 %v1242
      %v1244 = vlaneseq
      %v1245 = vshrl.u32 %v1244, 7
      %v1246 = vsub.s32 %v1243, %v1245
      %v1247 = vrot.slane %v1240, %v1246
      %v1249 = vlaneseq
      %vm1250 = vcmp.ge.s32.totalorder %v1249, 0
      %vm1251 = vcmp.lt.s32.totalorder %v1249, 256
      %vm1252 = vmand %vm1250, %vm1251
      %1253 = vst.msk [vmem:[%s301] sm:$0x3] %vm1252, %v1247
      %s1254 = smul.u32 2, %s19
      %p1255 = scmp.lt.s32.totalorder %s1254, 3
      %s1256 = scalar_select %p1255, %s1254, 3
      %s1257 = scalar_lea.vmem %s7, %s1256
      // Predicated region
      $region49: #{edge_decoder.1} parent=47 // pred_check
        %p1258 = pneg %p194
      $region50: #{edge_decoder.1} parent=47 // pred_check_branch
        %1260 = sbr.rel (%p1258) target = $region52
      $region51: #{edge_decoder.1} parent=47 // pred_region
        %s1261 = smul.u32 2, %s19
      $region52: #{edge_decoder.1} parent=47 // pred_fallthru
        _
    $region48: #{edge_decoder.1} parent=5 // pred_fallthru
      _
    %p1262 = scmp.le.s32.totalorder 2, %s14
    // Predicated region
    $region53: #{edge_decoder.1} parent=5 // pred_check
      %p1263 = pneg %p1262
    $region54: #{edge_decoder.1} parent=5 // pred_check_branch
      %1265 = sbr.rel (%p1263) target = $region56
    $region55: #{edge_decoder.1} parent=5 // pred_region
      %s1266 = ssub.s32 %s14, 2
      // Predicated region
      $region57: #{edge_decoder.1} parent=55 // pred_check
        %p1267 = pneg %p200
      $region58: #{edge_decoder.1} parent=55 // pred_check_branch
        %1269 = sbr.rel (%p1267) target = $region60
      $region59: #{edge_decoder.1} parent=55 // pred_region
        %s1270 = smul.u32 2, %s20
        %p1271 = scmp.lt.s32.totalorder %s1270, 3
        %s1272 = scalar_select %p1271, %s1270, 3
        %s1273 = scalar_lea.vmem %s7, %s1272
      $region60: #{edge_decoder.1} parent=55 // pred_fallthru
        _
    $region56: #{edge_decoder.1} parent=5 // pred_fallthru
      _
  $region6: #{edge_decoder.1} parent=0 // loop_footer
    %s18 = sadd.s32 1, %s14
  $region7: #{edge_decoder.1} parent=0 // loop_footer_branch
    %13 = sbr.rel target = $region3
  $region8: #{edge_decoder.1} parent=0 // loop_exit
    _

</llo_original>
